<compile_context>
chip_gen: v5e
topology: v5e:2x2
jax: 0.10.0
libtpu: 0.0.40
codegen_flags: <defaults>
</compile_context>

<pallas_src>
import math

import jax
import jax.numpy as jnp
from jax.experimental import pallas as pl
from jax.experimental.pallas import tpu as pltpu


def _symbolic_attention_kernel(x_ref, wsb_ref, bsb_ref, wout_ref, gbc_ref, o_ref):
    # x_ref   : (tq, D)      input row tile (bf16 or f32)
    # wsb_ref : (D, H*N)     folded query-proj @ blockdiag(binding.T)
    # bsb_ref : (1, H*N)     folded bias (f32, added to the f32 accumulator)
    # wout_ref: (H*N, Wn)    [blockdiag(symbol_library) | blockdiag(ones(N,1)) | 0-pad]
    # gbc_ref : (H, H*Ds)    per-head broadcast-back matrix (f32)
    # o_ref   : (tq, H*Ds)   lane-dense output (H*Ds = 128 here)
    h, hds = gbc_ref.shape

    # Scores for all heads in a single MXU pass (query projection pre-folded).
    s = jnp.dot(x_ref[...], wsb_ref[...],
                preferred_element_type=jnp.float32) + bsb_ref[...]      # (tq, H*N)

    # Softmax numerator.  The global row max is constant within each head group,
    # hence a valid stabilizer; exp stays f32 on the EUP.
    m = jnp.max(s, axis=-1, keepdims=True)
    p = jnp.exp(s - m)                                                   # (tq, H*N)

    # One wide MXU pass yields both the unnormalized retrieved symbols
    # (lanes [0, H*Ds)) and the per-head denominators (lanes [H*Ds, H*Ds+H)).
    pe = jnp.dot(p.astype(wout_ref.dtype), wout_ref[...],
                 preferred_element_type=jnp.float32)                    # (tq, Wn)
    raw = pe[:, :hds]                                                    # (tq, H*Ds)
    gsum = jnp.maximum(pe[:, hds:hds + h], 1e-30)                        # guard /0
    inv = pl.reciprocal(gsum, approx=True)                               # EUP slot

    # Broadcast 1/denominator back to 128 lanes with one tiny K=H matmul
    # (cheaper than an XLU relayout) and normalize lane-dense.
    denom = jnp.dot(inv, gbc_ref[...], preferred_element_type=jnp.float32)
    o_ref[...] = (raw * denom).astype(o_ref.dtype)


def pack_symbolic_attention_params(wq_t, bq, binding_vectors, symbol_library,
                                   *, num_heads, mxu_dtype=jnp.bfloat16):
    """One-time parameter packing (hoisted out of the per-call path).

    wq_t: (D, H*D) pre-transposed nn.Linear weight; bq: (1, H*D) bias.
    """
    D = wq_t.shape[0]
    N, Ds = symbol_library.shape
    H = num_heads
    f32 = jnp.float32
    eye = jnp.eye(H, dtype=f32)

    bd_bv = jnp.kron(eye, binding_vectors.T.astype(f32))        # (H*D, H*N)
    w_sb = wq_t.astype(f32) @ bd_bv                              # (D, H*N)   folded
    b_sb = bq.astype(f32).reshape(1, -1) @ bd_bv                 # (1, H*N)   folded

    bd_sl = jnp.kron(eye, symbol_library.astype(f32))            # (H*N, H*Ds)
    g_sum = jnp.kron(eye, jnp.ones((N, 1), f32))                 # (H*N, H)
    pad = (-(H * Ds + H)) % 128                                  # lane-align to 128
    w_out = jnp.concatenate(
        [bd_sl, g_sum, jnp.zeros((H * N, pad), f32)], axis=1)    # (H*N, Wn)
    g_bc = jnp.kron(eye, jnp.ones((1, Ds), f32))                 # (H, H*Ds)

    return {
        "w_sb": w_sb.astype(mxu_dtype),     # bf16 MXU feed by default
        "b_sb": b_sb,                       # stays f32 (added to f32 accumulator)
        "w_out": w_out.astype(mxu_dtype),
        "g_bc": g_bc,                       # tiny K=H matmul, kept f32
    }


@jax.jit
def symbolic_attention_forward(X, params):
    """X: (B, S, object_dim) -> (B, S, num_heads * symbol_dim)."""
    B, S, D = X.shape
    w_sb, b_sb = params["w_sb"], params["b_sb"]
    w_out, g_bc = params["w_out"], params["g_bc"]
    H, HDs = g_bc.shape
    HN = w_sb.shape[1]
    Wn = w_out.shape[1]

    BS = B * S
    x2d = X.reshape(BS, D).astype(w_sb.dtype)
    BS_pad = ((BS + 7) // 8) * 8                    # sublane-align the row axis
    if BS_pad != BS:
        x2d = jnp.pad(x2d, ((0, BS_pad - BS), (0, 0)))

    # Row-tiled grid: weights resident (constant index_map), x/out double-buffered.
    # Degenerates to one grid step at toy sizes; scales + shards across TCs (v7x).
    tq = min(512, BS_pad)
    grid = (pl.cdiv(BS_pad, tq),)

    itemsize = jnp.dtype(w_sb.dtype).itemsize
    flops = 2 * BS_pad * (D * HN + HN * Wn + H * HDs)
    transcendentals = BS_pad * (HN + H)
    bytes_accessed = (BS_pad * D * itemsize + w_sb.size * itemsize
                      + b_sb.size * 4 + w_out.size * itemsize
                      + g_bc.size * 4 + BS_pad * HDs * 4)

    out2d = pl.pallas_call(
        _symbolic_attention_kernel,
        out_shape=jax.ShapeDtypeStruct((BS_pad, HDs), jnp.float32),
        grid=grid,
        in_specs=[
            pl.BlockSpec((tq, D), lambda i: (i, 0)),
            pl.BlockSpec((D, HN), lambda i: (0, 0)),
            pl.BlockSpec((1, HN), lambda i: (0, 0)),
            pl.BlockSpec((HN, Wn), lambda i: (0, 0)),
            pl.BlockSpec((H, HDs), lambda i: (0, 0)),
        ],
        out_specs=pl.BlockSpec((tq, HDs), lambda i: (i, 0)),
        compiler_params=pltpu.CompilerParams(
            dimension_semantics=("parallel",)),
        cost_estimate=pl.CostEstimate(flops=flops,
                                      transcendentals=transcendentals,
                                      bytes_accessed=bytes_accessed),
    )(x2d, w_sb, b_sb, w_out, g_bc)

    return out2d[:BS].reshape(B, S, HDs)


def _module_reference(X, wq_t, bq, binding_vectors, symbol_library, *, num_heads):
    """Plain-JAX f32 mirror of the PyTorch SymbolicAttention.forward."""
    B, S, D = X.shape
    N, Ds = symbol_library.shape
    q = X @ wq_t + bq
    q = q.reshape(B, S, num_heads, D).transpose(0, 2, 1, 3)       # (B, H, S, D)
    scores = jnp.einsum('bhsd,nd->bhsn', q, binding_vectors)
    attn = jax.nn.softmax(scores, axis=-1)
    retrieved = jnp.einsum('bhsn,nd->bhsd', attn, symbol_library)
    return retrieved.transpose(0, 2, 1, 3).reshape(B, S, num_heads * Ds)


def _packed_reference(X, params):
    """Plain-JAX mirror of the kernel math using the SAME packed/cast operands;
    isolates kernel mechanics from the bf16 quantization of the operands."""
    B, S, D = X.shape
    w_sb, b_sb = params["w_sb"], params["b_sb"]
    w_out, g_bc = params["w_out"], params["g_bc"]
    H, HDs = g_bc.shape
    x2d = X.reshape(B * S, D).astype(w_sb.dtype)
    s = jnp.dot(x2d, w_sb, preferred_element_type=jnp.float32) + b_sb
    p = jnp.exp(s - jnp.max(s, axis=-1, keepdims=True))
    pe = jnp.dot(p.astype(w_out.dtype), w_out, preferred_element_type=jnp.float32)
    denom = (1.0 / pe[:, HDs:HDs + H]) @ g_bc
    return (pe[:, :HDs] * denom).reshape(B, S, HDs)


if __name__ == "__main__":
    B, S = 2, 8
    object_dim, symbol_dim, num_symbols, num_heads = 32, 32, 16, 4

    root = jax.random.PRNGKey(0)
    k_sym, k_bind, k_w, k_b, k_x = jax.random.split(root, 5)

    # Parameters (shapes match the PyTorch module; Linear weight stored
    # pre-transposed as (in_features, out_features)).
    symbol_library = jax.random.normal(k_sym, (num_symbols, symbol_dim), jnp.float32)
    binding_vectors = jax.random.normal(k_bind, (num_symbols, object_dim), jnp.float32)
    bound = 1.0 / math.sqrt(object_dim)
    wq_t = jax.random.uniform(k_w, (object_dim, object_dim * num_heads),
                              jnp.float32, -bound, bound)
    bq = jax.random.uniform(k_b, (1, object_dim * num_heads),
                            jnp.float32, -bound, bound)
    X = jax.random.normal(k_x, (B, S, object_dim), jnp.float32)

    ref = _module_reference(X, wq_t, bq, binding_vectors, symbol_library,
                            num_heads=num_heads)

    # 1) f32-operand packing: validates the folded/fused algorithm against the
    #    module semantics (tolerance limited by approx reciprocal ~1e-4 rel).
    params_f32 = pack_symbolic_attention_params(
        wq_t, bq, binding_vectors, symbol_library,
        num_heads=num_heads, mxu_dtype=jnp.float32)
    out_f32 = jax.block_until_ready(symbolic_attention_forward(X, params_f32))
    assert out_f32.shape == (B, S, num_heads * symbol_dim)
    assert jnp.allclose(out_f32, ref, atol=5e-3, rtol=5e-3), \
        "f32 kernel vs module reference mismatch"

    # 2) bf16-operand packing (the fast MXU path): validated against a plain-JAX
    #    mirror that uses the identical packed/cast operands.
    params_bf16 = pack_symbolic_attention_params(
        wq_t, bq, binding_vectors, symbol_library,
        num_heads=num_heads, mxu_dtype=jnp.bfloat16)
    out_bf16 = jax.block_until_ready(symbolic_attention_forward(X, params_bf16))
    packed_ref = _packed_reference(X, params_bf16)
    assert out_bf16.shape == (B, S, num_heads * symbol_dim)
    assert jnp.allclose(out_bf16, packed_ref, atol=5e-3, rtol=5e-3), \
        "bf16 kernel vs packed reference mismatch"

    print("KERNEL_OK")
</pallas_src>

<mosaic_0001>
module attributes {stable_mosaic.version = 11 : i64} {
  func.func @_symbolic_attention_kernel(%arg0: i32, %arg1: memref<16x32xf32, #tpu.memory_space<vmem>>, %arg2: memref<32x64xf32, #tpu.memory_space<vmem>>, %arg3: memref<1x64xf32, #tpu.memory_space<vmem>>, %arg4: memref<64x256xf32, #tpu.memory_space<vmem>>, %arg5: memref<4x128xf32, #tpu.memory_space<vmem>>, %arg6: memref<16x128xf32, #tpu.memory_space<vmem>>) attributes {dimension_semantics = [#tpu.dimension_semantics<parallel>], iteration_bounds = array<i64: 1>, scalar_prefetch = 0 : i64, scratch_operands = 0 : i64, tpu.core_type = #tpu.core_type<tc>, window_params = [{transform_indices = @transform_0, window_bounds = array<i64: 16, 32>}, {pipeline_mode = #tpu.pipeline_mode<synchronous>, transform_indices = @transform_1, window_bounds = array<i64: 32, 64>}, {pipeline_mode = #tpu.pipeline_mode<synchronous>, transform_indices = @transform_2, window_bounds = array<i64: 1, 64>}, {pipeline_mode = #tpu.pipeline_mode<synchronous>, transform_indices = @transform_3, window_bounds = array<i64: 64, 256>}, {pipeline_mode = #tpu.pipeline_mode<synchronous>, transform_indices = @transform_4, window_bounds = array<i64: 4, 128>}, {transform_indices = @transform_5, window_bounds = array<i64: 16, 128>}]} {
    %c0 = arith.constant 0 : index
    %c0_0 = arith.constant 0 : index
    %0 = vector.load %arg1[%c0, %c0_0] : memref<16x32xf32, #tpu.memory_space<vmem>>, vector<16x32xf32>
    %c0_1 = arith.constant 0 : index
    %c0_2 = arith.constant 0 : index
    %1 = vector.load %arg2[%c0_1, %c0_2] : memref<32x64xf32, #tpu.memory_space<vmem>>, vector<32x64xf32>
    %cst = arith.constant dense<0.000000e+00> : vector<16x64xf32>
    %2 = tpu.matmul %0, %1, %cst {dimension_numbers = #tpu.dot_dimension_numbers<[1], [0], [0], [1], [0, 0, 1, 1], [], []>} : vector<16x32xf32>, vector<32x64xf32>, vector<16x64xf32> -> vector<16x64xf32>
    %c0_3 = arith.constant 0 : index
    %c0_4 = arith.constant 0 : index
    %3 = vector.load %arg3[%c0_3, %c0_4] : memref<1x64xf32, #tpu.memory_space<vmem>>, vector<1x64xf32>
    %4 = vector.broadcast %3 : vector<1x64xf32> to vector<16x64xf32>
    %5 = arith.addf %2, %4 : vector<16x64xf32>
    %cst_5 = arith.constant dense<0xFF800000> : vector<16xf32>
    %6 = vector.multi_reduction <maximumf>, %5, %cst_5 [1] : vector<16x64xf32> to vector<16xf32>
    %7 = vector.shape_cast %6 : vector<16xf32> to vector<16x1xf32>
    %8 = vector.broadcast %7 : vector<16x1xf32> to vector<16x64xf32>
    %9 = arith.subf %5, %8 : vector<16x64xf32>
    %10 = math.exp %9 : vector<16x64xf32>
    %c0_6 = arith.constant 0 : index
    %c0_7 = arith.constant 0 : index
    %11 = vector.load %arg4[%c0_6, %c0_7] : memref<64x256xf32, #tpu.memory_space<vmem>>, vector<64x256xf32>
    %cst_8 = arith.constant dense<0.000000e+00> : vector<16x256xf32>
    %12 = tpu.matmul %10, %11, %cst_8 {dimension_numbers = #tpu.dot_dimension_numbers<[1], [0], [0], [1], [0, 0, 1, 1], [], []>} : vector<16x64xf32>, vector<64x256xf32>, vector<16x256xf32> -> vector<16x256xf32>
    %13 = vector.extract_strided_slice %12 {offsets = [0, 0], sizes = [16, 128], strides = [1, 1]} : vector<16x256xf32> to vector<16x128xf32>
    %14 = vector.extract_strided_slice %12 {offsets = [0, 128], sizes = [16, 4], strides = [1, 1]} : vector<16x256xf32> to vector<16x4xf32>
    %cst_9 = arith.constant 1.000000e-30 : f32
    %15 = vector.broadcast %cst_9 : f32 to vector<16x4xf32>
    %16 = arith.maximumf %14, %15 : vector<16x4xf32>
    %17 = tpu.reciprocal %16 {approx = true} : vector<16x4xf32> -> vector<16x4xf32>
    %c0_10 = arith.constant 0 : index
    %c0_11 = arith.constant 0 : index
    %18 = vector.load %arg5[%c0_10, %c0_11] : memref<4x128xf32, #tpu.memory_space<vmem>>, vector<4x128xf32>
    %cst_12 = arith.constant dense<0.000000e+00> : vector<16x128xf32>
    %19 = tpu.matmul %17, %18, %cst_12 {dimension_numbers = #tpu.dot_dimension_numbers<[1], [0], [0], [1], [0, 0, 1, 1], [], []>} : vector<16x4xf32>, vector<4x128xf32>, vector<16x128xf32> -> vector<16x128xf32>
    %20 = arith.mulf %13, %19 : vector<16x128xf32>
    %c0_13 = arith.constant 0 : index
    %c0_14 = arith.constant 0 : index
    %21 = vector.load %arg6[%c0_13, %c0_14] : memref<16x128xf32, #tpu.memory_space<vmem>>, vector<16x128xf32>
    tpu.vector_store %arg6[%c0_13, %c0_14], %20 {strides = array<i32>} : memref<16x128xf32, #tpu.memory_space<vmem>>, vector<16x128xf32>,
    return
  }
  func.func @transform_0(%arg0: i32) -> (i32, i32) {
    %c0_i32 = arith.constant 0 : i32
    %c0_i32_0 = arith.constant 0 : i32
    return %arg0, %c0_i32 : i32, i32
  }
  func.func @transform_1(%arg0: i32) -> (i32, i32) {
    %c0_i32 = arith.constant 0 : i32
    %c0_i32_0 = arith.constant 0 : i32
    %c0_i32_1 = arith.constant 0 : i32
    return %c0_i32, %c0_i32_0 : i32, i32
  }
  func.func @transform_2(%arg0: i32) -> (i32, i32) {
    %c0_i32 = arith.constant 0 : i32
    %c0_i32_0 = arith.constant 0 : i32
    %c0_i32_1 = arith.constant 0 : i32
    return %c0_i32, %c0_i32_0 : i32, i32
  }
  func.func @transform_3(%arg0: i32) -> (i32, i32) {
    %c0_i32 = arith.constant 0 : i32
    %c0_i32_0 = arith.constant 0 : i32
    %c0_i32_1 = arith.constant 0 : i32
    return %c0_i32, %c0_i32_0 : i32, i32
  }
  func.func @transform_4(%arg0: i32) -> (i32, i32) {
    %c0_i32 = arith.constant 0 : i32
    %c0_i32_0 = arith.constant 0 : i32
    %c0_i32_1 = arith.constant 0 : i32
    return %c0_i32, %c0_i32_0 : i32, i32
  }
  func.func @transform_5(%arg0: i32) -> (i32, i32) {
    %c0_i32 = arith.constant 0 : i32
    %c0_i32_0 = arith.constant 0 : i32
    return %arg0, %c0_i32 : i32, i32
  }
}

</mosaic_0001>

<llo_original>
// kernel: symbolic_attention_forward.1
$region0: #{symbolic_attention_forward.1}
  #allocation0 [shape = 'u32[]', space=smem, size = 0x4, offset = 0x4, fixed_abs, tag = 'smem constant byte address 0x4 - core index']
  #allocation1 [shape = 'u32[72,128]{1,0:T(1,128)}', space=vmem, size = 0x9000, scoped, tag = 'internal scratch']
  %s0 = inlined_call_operand.hbm [shape: f32[16,32], index: 0, kind: input, shape index: {}]
  %s1 = inlined_call_operand.hbm [shape: f32[32,64], index: 1, kind: input, shape index: {}]
  %s2 = inlined_call_operand.vmem [shape: f32[1,64], index: 2, kind: input, shape index: {}]
  %s3 = inlined_call_operand.hbm [shape: f32[64,256], index: 3, kind: input, shape index: {}]
  %s4 = inlined_call_operand.hbm [shape: f32[4,128], index: 4, kind: input, shape index: {}]
  %s5 = inlined_call_operand.hbm [shape: f32[16,128], index: 5, kind: output, shape index: {}]
  %s6 = sld [smem:[#allocation0]]
  $region46: #{symbolic_attention_forward.1} parent=0
    _
  %s8 = ssub.s32 1, %s6
  %s9 = scalar_select 0, %s8, %s6
  $region1: #{symbolic_attention_forward.1} parent=0
    #allocation2 [shape = 'u8[8192]{0}', space=vmem, size = 0x2000, scoped, tag = 'input window, operand 0, single buffered']
    #allocation3 [shape = 's32[1]{0}', space=sflag, size = 0x4, scoped, tag = 'scoped memory for symbolic_attention_forward.1']
    #allocation4 [shape = 's32[1]{0}', space=sflag, size = 0x4, scoped, tag = 'scoped memory for symbolic_attention_forward.1']
    #allocation5 [shape = 'u8[16384]{0}', space=vmem, size = 0x4000, scoped, tag = 'input window, operand 1, single buffered']
    #allocation6 [shape = 's32[1]{0}', space=sflag, size = 0x4, scoped, tag = 'scoped memory for symbolic_attention_forward.1']
    #allocation7 [shape = 'u8[65536]{0}', space=vmem, size = 0x10000, scoped, tag = 'input window, operand 3, single buffered']
    #allocation8 [shape = 'u8[2048]{0}', space=vmem, size = 0x800, scoped, tag = 'input window, operand 4, single buffered']
    #allocation9 [shape = 's32[1]{0}', space=sflag, size = 0x4, scoped, tag = 'scoped memory for symbolic_attention_forward.1']
    #allocation10 [shape = 'u8[8192]{0}', space=vmem, size = 0x2000, scoped, tag = 'output window, operand 0, single buffered']
    %10 = vsyncpa [#allocation3], 0
    %11 = vsyncpa [#allocation6], 0
    %12 = vsyncpa [#allocation9], 0
    %13 = vsyncpa [#allocation4], 0
    // Predicated region
    $region2: #{symbolic_attention_forward.1} parent=1 // pred_check
      _
    $region3: #{symbolic_attention_forward.1} parent=1 // pred_check_branch
      %15 = sbr.rel (0) target = $region5
    $region4: #{symbolic_attention_forward.1} parent=1 // pred_region
      %17 = vsyncadd [#allocation3], 0
      %s18 = sshll.u32 %s0, 4
      %s19 = int_to_ptr.hbm [resolvable:$true] %s18
      %s20 = sshll.u32 [#allocation2], 4
      %s21 = int_to_ptr.vmem [resolvable:$true] %s20
      %26 = dma.hbm_to_vmem [thread:$0]  %s19, 256, %s21, [#allocation3], 128, 128, 8
    $region5: #{symbolic_attention_forward.1} parent=1 // pred_fallthru
      _
    // Predicated region
    $region6: #{symbolic_attention_forward.1} parent=1 // pred_check
      _
    $region7: #{symbolic_attention_forward.1} parent=1 // pred_check_branch
      %28 = sbr.rel (0) target = $region9
    $region8: #{symbolic_attention_forward.1} parent=1 // pred_region
      %30 = vsyncadd [#allocation6], 0
      %s31 = sshll.u32 %s1, 4
      %s32 = int_to_ptr.hbm [resolvable:$true] %s31
      %s33 = sshll.u32 [#allocation5], 4
      %s34 = int_to_ptr.vmem [resolvable:$true] %s33
      %39 = dma.hbm_to_vmem [thread:$0]  %s32, 512, %s34, [#allocation6], 128, 128, 8
    $region9: #{symbolic_attention_forward.1} parent=1 // pred_fallthru
      _
    // Predicated region
    $region10: #{symbolic_attention_forward.1} parent=1 // pred_check
      _
    $region11: #{symbolic_attention_forward.1} parent=1 // pred_check_branch
      %41 = sbr.rel (0) target = $region13
    $region12: #{symbolic_attention_forward.1} parent=1 // pred_region
      _
    $region13: #{symbolic_attention_forward.1} parent=1 // pred_fallthru
      _
    // Predicated region
    $region14: #{symbolic_attention_forward.1} parent=1 // pred_check
      _
    $region15: #{symbolic_attention_forward.1} parent=1 // pred_check_branch
      %43 = sbr.rel (0) target = $region17
    $region16: #{symbolic_attention_forward.1} parent=1 // pred_region
      %45 = vsyncadd [#allocation6], 0
      %s46 = sshll.u32 %s3, 4
      %s47 = int_to_ptr.hbm [resolvable:$true] %s46
      %s48 = sshll.u32 [#allocation7], 4
      %s49 = int_to_ptr.vmem [resolvable:$true] %s48
      %54 = dma.hbm_to_vmem [thread:$0]  %s47, 2048, %s49, [#allocation6], 256, 256, 16
    $region17: #{symbolic_attention_forward.1} parent=1 // pred_fallthru
      _
    // Predicated region
    $region18: #{symbolic_attention_forward.1} parent=1 // pred_check
      _
    $region19: #{symbolic_attention_forward.1} parent=1 // pred_check_branch
      %56 = sbr.rel (0) target = $region21
    $region20: #{symbolic_attention_forward.1} parent=1 // pred_region
      %58 = vsyncadd [#allocation9], 0
      %s60 = sshll.u32 %s4, 4
      %s61 = int_to_ptr.hbm [resolvable:$true] %s60
      %s62 = sshll.u32 [#allocation8], 4
      %s63 = int_to_ptr.vmem [resolvable:$true] %s62
      %65 = dma.hbm_to_vmem [thread:$0]  %s61, 64, %s63, [#allocation9]
    $region21: #{symbolic_attention_forward.1} parent=1 // pred_fallthru
      _
    // Predicated region
    $region22: #{symbolic_attention_forward.1} parent=1 // pred_check
      _
    $region23: #{symbolic_attention_forward.1} parent=1 // pred_check_branch
      %67 = sbr.rel (0) target = $region25
    $region24: #{symbolic_attention_forward.1} parent=1 // pred_region
      %69 = dma.done [#allocation3], 256
    $region25: #{symbolic_attention_forward.1} parent=1 // pred_fallthru
      _
    // Predicated region
    $region26: #{symbolic_attention_forward.1} parent=1 // pred_check
      _
    $region27: #{symbolic_attention_forward.1} parent=1 // pred_check_branch
      %71 = sbr.rel (0) target = $region29
    $region28: #{symbolic_attention_forward.1} parent=1 // pred_region
      %73 = dma.done [#allocation6], 512
    $region29: #{symbolic_attention_forward.1} parent=1 // pred_fallthru
      _
    // Predicated region
    $region30: #{symbolic_attention_forward.1} parent=1 // pred_check
      _
    $region31: #{symbolic_attention_forward.1} parent=1 // pred_check_branch
      %75 = sbr.rel (0) target = $region33
    $region32: #{symbolic_attention_forward.1} parent=1 // pred_region
      %77 = dma.done [#allocation6], 2048
    $region33: #{symbolic_attention_forward.1} parent=1 // pred_fallthru
      _
    // Predicated region
    $region34: #{symbolic_attention_forward.1} parent=1 // pred_check
      _
    $region35: #{symbolic_attention_forward.1} parent=1 // pred_check_branch
      %79 = sbr.rel (0) target = $region37
    $region36: #{symbolic_attention_forward.1} parent=1 // pred_region
      %81 = dma.done [#allocation9], 64
    $region37: #{symbolic_attention_forward.1} parent=1 // pred_fallthru
      _
    %v82 = vld [vmem:[#allocation2] sm:$0xff]
    %v83 = vld [vmem:[#allocation2 + $0x8] sm:$0xff]
    %v84 = vld [vmem:[#allocation5] sm:$0xff]
    %v85 = vld [vmem:[#allocation5 + $0x8] sm:$0xff]
    %v86 = vld [vmem:[#allocation5 + $0x10] sm:$0xff]
    %v87 = vld [vmem:[#allocation5 + $0x18] sm:$0xff]
    %v88 = vld [vmem:[%s2] sm:$0x1]
    %v90 = vperm.slane %v88, 0
    %vm92 = vcmask 261120
    %v94 = vsel %vm92, %v82, 0
    %v97 = vsel %vm92, %v83, 0
    %99 = vmatpush.msra.mxu0 0.0
    %100 = vmatpush.msra.mxu0 0.0
    %101 = vmatpush.msra.mxu0 0.0
    %102 = vmatpush.msra.mxu0 0.0
    %103 = vmatpush.msra.mxu0 0.0
    %104 = vmatpush.msra.mxu0 0.0
    %105 = vmatpush.msra.mxu0 0.0
    %106 = vmatpush.msra.mxu0 0.0
    %107 = vmatpush.msra.mxu0 0.0
    %108 = vmatpush.msra.mxu0 0.0
    %109 = vmatpush.msra.mxu0 0.0
    %110 = vmatpush.msra.mxu0 0.0
    %111 = vmatpush.msra.mxu0 %v87
    %112 = vmatpush.msra.mxu0 %v86
    %113 = vmatpush.msra.mxu0 %v85
    %114 = vmatpush.msra.mxu0 %v84
    %115 = vmatmul.f32.gmra.mxu0 %v94
    %v116 = vpop.f32.mrf.mxu0
    %v117 = vadd.f32 %v90, %v116
    %118 = vmatmul.f32.gmra.mxu0 %v97
    %v119 = vpop.f32.mrf.mxu0
    %v120 = vadd.f32 %v90, %v119
    %121 = vdwg.mxu0
    %vm122 = vcmask 523264
    %v123 = vsel %vm122, %v117, -inf
    %124 = vmax.xlane.f32.xlu0 %v123
    %v125 = vpop.xlane.xlu0 %124
    %v126 = vsel %vm122, %v120, -inf
    %127 = vmax.xlane.f32.xlu0 %v126
    %v128 = vpop.xlane.xlu0 %127
    %v129 = vsub.f32 %v117, %v125
    %v130 = vsub.f32 %v120, %v128
    %v131 = vmul.f32 %v129, 1.442695
    %v132 = vpow.pop %v131
    %v133 = vmul.f32 %v130, 1.442695
    %v134 = vpow.pop %v133
    %v135 = vld [vmem:[#allocation7] sm:$0xff]
    %v136 = vld [vmem:[#allocation7 + $0x8] sm:$0xff]
    %v137 = vld [vmem:[#allocation7 + $0x10] sm:$0xff]
    %v138 = vld [vmem:[#allocation7 + $0x18] sm:$0xff]
    %v139 = vld [vmem:[#allocation7 + $0x20] sm:$0xff]
    %v140 = vld [vmem:[#allocation7 + $0x28] sm:$0xff]
    %v141 = vld [vmem:[#allocation7 + $0x30] sm:$0xff]
    %v142 = vld [vmem:[#allocation7 + $0x38] sm:$0xff]
    %v143 = vld [vmem:[#allocation7 + $0x40] sm:$0xff]
    %v144 = vld [vmem:[#allocation7 + $0x48] sm:$0xff]
    %v145 = vld [vmem:[#allocation7 + $0x50] sm:$0xff]
    %v146 = vld [vmem:[#allocation7 + $0x58] sm:$0xff]
    %v147 = vld [vmem:[#allocation7 + $0x60] sm:$0xff]
    %v148 = vld [vmem:[#allocation7 + $0x68] sm:$0xff]
    %v149 = vld [vmem:[#allocation7 + $0x70] sm:$0xff]
    %v150 = vld [vmem:[#allocation7 + $0x78] sm:$0xff]
    %v152 = vsel %vm122, %v132, 0
    %v155 = vsel %vm122, %v134, 0
    %157 = vmatpush.msra.mxu0 0.0
    %158 = vmatpush.msra.mxu0 0.0
    %159 = vmatpush.msra.mxu0 0.0
    %160 = vmatpush.msra.mxu0 0.0
    %161 = vmatpush.msra.mxu0 0.0
    %162 = vmatpush.msra.mxu0 0.0
    %163 = vmatpush.msra.mxu0 0.0
    %164 = vmatpush.msra.mxu0 0.0
    %165 = vmatpush.msra.mxu0 %v149
    %166 = vmatpush.msra.mxu0 %v147
    %167 = vmatpush.msra.mxu0 %v145
    %168 = vmatpush.msra.mxu0 %v143
    %169 = vmatpush.msra.mxu0 %v141
    %170 = vmatpush.msra.mxu0 %v139
    %171 = vmatpush.msra.mxu0 %v137
    %172 = vmatpush.msra.mxu0 %v135
    %173 = vmatmul.f32.gmra.mxu0 %v152
    %v174 = vpop.f32.mrf.mxu0
    %v175 = vadd.f32 0.0, %v174
    %176 = vmatmul.f32.gmra.mxu0 %v155
    %v177 = vpop.f32.mrf.mxu0
    %v178 = vadd.f32 0.0, %v177
    %179 = vdwg.mxu0
    %180 = vmatpush.msra.mxu0 0.0
    %181 = vmatpush.msra.mxu0 0.0
    %182 = vmatpush.msra.mxu0 0.0
    %183 = vmatpush.msra.mxu0 0.0
    %184 = vmatpush.msra.mxu0 0.0
    %185 = vmatpush.msra.mxu0 0.0
    %186 = vmatpush.msra.mxu0 0.0
    %187 = vmatpush.msra.mxu0 0.0
    %188 = vmatpush.msra.mxu0 %v150
    %189 = vmatpush.msra.mxu0 %v148
    %190 = vmatpush.msra.mxu0 %v146
    %191 = vmatpush.msra.mxu0 %v144
    %192 = vmatpush.msra.mxu0 %v142
    %193 = vmatpush.msra.mxu0 %v140
    %194 = vmatpush.msra.mxu0 %v138
    %195 = vmatpush.msra.mxu0 %v136
    %196 = vmatmul.f32.gmra.mxu0 %v152
    %v197 = vpop.f32.mrf.mxu0
    %v198 = vadd.f32 0.0, %v197
    %199 = vmatmul.f32.gmra.mxu0 %v155
    %v200 = vpop.f32.mrf.mxu0
    %v201 = vadd.f32 0.0, %v200
    %202 = vdwg.mxu0
    %v203 = vmax.f32 %v198, 1e-30
    %v204 = vmax.f32 %v201, 1e-30
    %v205 = vrcp.pop %v203
    %v206 = vrcp.pop %v204
    %v207 = vld [vmem:[#allocation8] sm:$0xf]
    %vm208 = vcmask 31744
    %v210 = vsel %vm208, %v205, 0
    %v213 = vsel %vm208, %v206, 0
    %vm215 = vcmask 1043456
    %v217 = vsel %vm215, %v207, 0
    %219 = vmatpush.msra.mxu0 0.0
    %220 = vmatpush.msra.mxu0 0.0
    %221 = vmatpush.msra.mxu0 0.0
    %222 = vmatpush.msra.mxu0 0.0
    %223 = vmatpush.msra.mxu0 0.0
    %224 = vmatpush.msra.mxu0 0.0
    %225 = vmatpush.msra.mxu0 0.0
    %226 = vmatpush.msra.mxu0 0.0
    %227 = vmatpush.msra.mxu0 0.0
    %228 = vmatpush.msra.mxu0 0.0
    %229 = vmatpush.msra.mxu0 0.0
    %230 = vmatpush.msra.mxu0 0.0
    %231 = vmatpush.msra.mxu0 0.0
    %232 = vmatpush.msra.mxu0 0.0
    %233 = vmatpush.msra.mxu0 0.0
    %234 = vmatpush.msra.mxu0 %v217
    %235 = vmatmul.f32.gmra.mxu0 %v210
    %v236 = vpop.f32.mrf.mxu0
    %v237 = vadd.f32 0.0, %v236
    %238 = vmatmul.f32.gmra.mxu0 %v213
    %v239 = vpop.f32.mrf.mxu0
    %v240 = vadd.f32 0.0, %v239
    %241 = vdwg.mxu0
    %v242 = vmul.f32 %v175, %v237
    %v243 = vmul.f32 %v178, %v240
    %244 = vst [vmem:[#allocation10] sm:$0xff] %v242
    %245 = vst [vmem:[#allocation10 + $0x8] sm:$0xff] %v243
    // Predicated region
    $region38: #{symbolic_attention_forward.1} parent=1 // pred_check
      _
    $region39: #{symbolic_attention_forward.1} parent=1 // pred_check_branch
      %247 = sbr.rel (0) target = $region41
    $region40: #{symbolic_attention_forward.1} parent=1 // pred_region
      %249 = vsyncadd [#allocation4], 0
      %s250 = sshll.u32 [#allocation10], 4
      %s251 = int_to_ptr.vmem [resolvable:$true] %s250
      %s252 = sshll.u32 %s5, 4
      %s253 = int_to_ptr.hbm [resolvable:$true] %s252
      %258 = dma.vmem_to_hbm [thread:$0]  %s251, 256, %s253, [#allocation4], 128, 128, 8
    $region41: #{symbolic_attention_forward.1} parent=1 // pred_fallthru
      _
    // Predicated region
    $region42: #{symbolic_attention_forward.1} parent=1 // pred_check
      _
    $region43: #{symbolic_attention_forward.1} parent=1 // pred_check_branch
      %260 = sbr.rel (0) target = $region45
    $region44: #{symbolic_attention_forward.1} parent=1 // pred_region
      %262 = dma.done [#allocation4], 256
    $region45: #{symbolic_attention_forward.1} parent=1 // pred_fallthru
      _
    %263 = vsyncpa [#allocation3], 1
    %264 = vsyncpa [#allocation6], 1
    %265 = vsyncpa [#allocation9], 1
    %266 = vsyncpa [#allocation4], 1

</llo_original>
